<compile_context>
chip_gen: v7x
topology: tpu7x:2x2x1
jax: 0.10.0
libtpu: 0.0.40
codegen_flags: <defaults>
</compile_context>

<pallas_src>
import jax
import jax.numpy as jnp
from jax.experimental import pallas as pl
from jax.experimental.pallas import tpu as pltpu

_LANES = 128
_CHUNK_LANES = 1024          # batch lanes processed per inner (unrolled) step
_HIDDEN_GROUP = 16           # hidden units per group -> temps are ~16 vregs
_DEFAULT_MAX_TILE = 32 * 1024  # lanes per grid step; sweepable (32K-128K range).
                               # NOTE: the chunk loop is fully unrolled, so
                               # kernel code size grows linearly with tb.


def _mlp_kernel(xT_ref, w1_ref, b1_ref, w2_ref, b2_ref, o_ref):
    """One [2, tb] -> [1, tb] tile of the 2-32-1 MLP, batch on lanes."""
    H = w1_ref.shape[0]
    tb = o_ref.shape[1]

    # Hoist parameter loads out of the chunk loop (JAX does not CSE
    # broadcast_in_dim; these are tiny VMEM-resident [G,1] vectors).
    b2 = b2_ref[0, 0].astype(jnp.float32)                     # SMEM scalar
    groups = []
    for g0 in range(0, H, _HIDDEN_GROUP):
        gsl = slice(g0, min(g0 + _HIDDEN_GROUP, H))
        groups.append((
            w1_ref[gsl, 0:1].astype(jnp.float32),              # [G, 1]
            w1_ref[gsl, 1:2].astype(jnp.float32),              # [G, 1]
            b1_ref[gsl, :].astype(jnp.float32),                # [G, 1]
            w2_ref[gsl, :].astype(jnp.float32),                # [G, 1]
        ))

    # Static chunk loop: offsets/widths are Python ints, so all accesses are
    # static, 128-aligned, unmasked loads/stores and per-chunk intermediates
    # ([G, chunk] f32 ~ 16 vregs) never round-trip through VMEM.
    for off in range(0, tb, _CHUNK_LANES):
        cw = min(_CHUNK_LANES, tb - off)
        x0 = xT_ref[0:1, off:off + cw].astype(jnp.float32)     # [1, cw]
        x1 = xT_ref[1:2, off:off + cw].astype(jnp.float32)     # [1, cw]
        y = None
        for (w10, w11, b1g, w2g) in groups:
            # fc1 (K=2): two broadcast multiply-adds on the VPU.
            h = jnp.maximum(w10 * x0 + w11 * x1 + b1g, 0.0)    # [G, cw]
            # fc2 partial: elementwise scale + sublane (XLU) reduction.
            part = jnp.sum(w2g * h, axis=0, keepdims=True)     # [1, cw]
            y = part if y is None else y + part
        y = jnp.maximum(y + b2, 0.0)
        o_ref[0:1, off:off + cw] = y.astype(o_ref.dtype)


def _round_up(n, m):
    return ((n + m - 1) // m) * m


def _choose_tile(batch, max_tile):
    """Lanes per grid step: lane-dense (multiple of 128), big enough to
    amortise the ~0.35us/step pipeline overhead, and >=2 grid steps whenever
    possible so ("parallel",) can shard across v7x's two TensorCores."""
    if batch <= _LANES:
        return batch                               # single full-extent block
    tb = min(max_tile, _round_up(batch, _LANES))
    if pl.cdiv(batch, tb) < 2:                     # guarantee >= 2 grid steps
        tb = _round_up(pl.cdiv(batch, 2), _LANES)
    if tb > _CHUNK_LANES:                          # keep inner chunks full-width
        tb = _round_up(tb, _CHUNK_LANES)
    return tb


def mymodel_forward_soa(x2b, w1, b1, w2, b2, *, tb=None):
    """Fast path.  x2b: feature-major ("SoA") input of shape [2, B] — the
    transpose of the PyTorch [B, 2] input, supplied by the producer so no
    wrapper-side transpose / extra HBM pass is needed.  Returns [1, B]."""
    assert x2b.ndim == 2 and x2b.shape[0] == 2, x2b.shape
    B = x2b.shape[1]
    H = w1.shape[0]
    if tb is None:
        tb = _choose_tile(B, _DEFAULT_MAX_TILE)

    return pl.pallas_call(
        _mlp_kernel,
        out_shape=jax.ShapeDtypeStruct((1, B), x2b.dtype),
        grid=(pl.cdiv(B, tb),),                    # ragged last block is masked
        in_specs=[
            pl.BlockSpec((2, tb), lambda i: (0, i)),   # x tile, pipelined over batch
            pl.BlockSpec((H, 2), lambda i: (0, 0)),    # w1, VMEM-resident
            pl.BlockSpec((H, 1), lambda i: (0, 0)),    # b1, VMEM-resident
            pl.BlockSpec((H, 1), lambda i: (0, 0)),    # w2 (=fc2.weight^T), resident
            pl.BlockSpec(memory_space=pltpu.SMEM),     # b2 scalar via scalar path
        ],
        out_specs=pl.BlockSpec((1, tb), lambda i: (0, i)),  # lane-dense output slab
        compiler_params=pltpu.CompilerParams(
            dimension_semantics=("parallel",),
            vmem_limit_bytes=32 * 1024 * 1024,
        ),
        cost_estimate=pl.CostEstimate(
            flops=230 * B,
            transcendentals=0,
            bytes_accessed=12 * B + 4 * (3 * H + 2 * H + 1),
        ),
    )(x2b, w1, b1, w2, b2)


def mymodel_forward(x, w1, b1, w2, b2, *, tb=None):
    """PyTorch-compatible interface: x is [B, 2], returns [B, 1].
    NOTE: this convenience path pays one extra HBM relayout pass for x.T (plus
    a tiny one for the output reshape); producers that can emit the
    feature-major [2, B] layout should call mymodel_forward_soa directly."""
    out_1b = mymodel_forward_soa(x.T, w1, b1, w2, b2, tb=tb)
    return out_1b.reshape(x.shape[0], 1)


def init_params(key):
    # Deterministic synthetic init (PyTorch nn.Linear uniform bounds).
    k1, k2, k3, k4 = jax.random.split(key, 4)
    bound1 = 1.0 / jnp.sqrt(2.0)     # fc1 fan_in = 2
    bound2 = 1.0 / jnp.sqrt(32.0)    # fc2 fan_in = 32
    w1 = jax.random.uniform(k1, (32, 2), jnp.float32, -bound1, bound1)   # fc1.weight
    b1 = jax.random.uniform(k2, (32, 1), jnp.float32, -bound1, bound1)   # fc1.bias
    w2 = jax.random.uniform(k3, (32, 1), jnp.float32, -bound2, bound2)   # fc2.weight^T
    b2 = jax.random.uniform(k4, (1, 1), jnp.float32, -bound2, bound2)    # fc2.bias
    return w1, b1, w2, b2


def _reference(x, w1, b1, w2, b2):
    h = jnp.maximum(x @ w1.T + b1.T, 0.0)
    return jnp.maximum(h @ w2 + b2, 0.0)


if __name__ == "__main__":
    key = jax.random.PRNGKey(0)
    kx, kp = jax.random.split(key)
    w1, b1, w2, b2 = init_params(kp)

    def check(batch, use_soa):
        kb = jax.random.fold_in(kx, batch)
        x = jax.random.normal(kb, (batch, 2), jnp.float32)
        ref = _reference(x, w1, b1, w2, b2)
        if use_soa:
            # Fast path: producer supplies feature-major [2, B]; no in-wrapper x.T.
            out = mymodel_forward_soa(jnp.asarray(x.T), w1, b1, w2, b2)
            out = out.reshape(batch, 1)
        else:
            out = mymodel_forward(x, w1, b1, w2, b2)
        out = jax.block_until_ready(out)
        assert out.shape == (batch, 1), (batch, out.shape)
        assert jnp.allclose(out, ref, atol=1e-5, rtol=1e-5), (batch, use_soa)

    # Tiny case (module-scale): single full-extent block.
    check(8, use_soa=False)
    # Grid of 2 "parallel" steps (megacore on v7x), 4 x 1024-lane chunks/step.
    check(8192, use_soa=True)
    # Ragged batch: tb=512, grid=cdiv(1000,512)=2, masked last block (no
    # single-full-block fallback, no VMEM blow-up).
    check(1000, use_soa=True)

    print("KERNEL_OK")
</pallas_src>

<mosaic_0001>
module attributes {stable_mosaic.version = 11 : i64} {
  func.func @_mlp_kernel(%arg0: i32, %arg1: memref<2x8xf32, #tpu.memory_space<vmem>>, %arg2: memref<32x2xf32, #tpu.memory_space<vmem>>, %arg3: memref<32x1xf32, #tpu.memory_space<vmem>>, %arg4: memref<32x1xf32, #tpu.memory_space<vmem>>, %arg5: memref<1x1xf32, #tpu.memory_space<smem>>, %arg6: memref<1x8xf32, #tpu.memory_space<vmem>>) attributes {dimension_semantics = [#tpu.dimension_semantics<parallel>], iteration_bounds = array<i64: 1>, scalar_prefetch = 0 : i64, scratch_operands = 0 : i64, tpu.core_type = #tpu.core_type<tc>, window_params = [{transform_indices = @transform_0, window_bounds = array<i64: 2, 8>}, {pipeline_mode = #tpu.pipeline_mode<synchronous>, transform_indices = @transform_1, window_bounds = array<i64: 32, 2>}, {pipeline_mode = #tpu.pipeline_mode<synchronous>, transform_indices = @transform_2, window_bounds = array<i64: 32, 1>}, {pipeline_mode = #tpu.pipeline_mode<synchronous>, transform_indices = @transform_3, window_bounds = array<i64: 32, 1>}, {transform_indices = @transform_4, window_bounds = array<i64: 1, 1>}, {transform_indices = @transform_5, window_bounds = array<i64: 1, 8>}]} {
    %c0 = arith.constant 0 : index
    %c0_0 = arith.constant 0 : index
    %0 = memref.load %arg5[%c0, %c0_0] : memref<1x1xf32, #tpu.memory_space<smem>>
    %c0_1 = arith.constant 0 : index
    %c0_2 = arith.constant 0 : index
    %1 = vector.load %arg2[%c0_1, %c0_2] : memref<32x2xf32, #tpu.memory_space<vmem>>, vector<16x1xf32>
    %c0_3 = arith.constant 0 : index
    %c1 = arith.constant 1 : index
    %2 = vector.load %arg2[%c0_3, %c1] : memref<32x2xf32, #tpu.memory_space<vmem>>, vector<16x1xf32>
    %c0_4 = arith.constant 0 : index
    %c0_5 = arith.constant 0 : index
    %3 = vector.load %arg3[%c0_4, %c0_5] : memref<32x1xf32, #tpu.memory_space<vmem>>, vector<16x1xf32>
    %c0_6 = arith.constant 0 : index
    %c0_7 = arith.constant 0 : index
    %4 = vector.load %arg4[%c0_6, %c0_7] : memref<32x1xf32, #tpu.memory_space<vmem>>, vector<16x1xf32>
    %c16 = arith.constant 16 : index
    %c0_8 = arith.constant 0 : index
    %5 = vector.load %arg2[%c16, %c0_8] : memref<32x2xf32, #tpu.memory_space<vmem>>, vector<16x1xf32>
    %c16_9 = arith.constant 16 : index
    %c1_10 = arith.constant 1 : index
    %6 = vector.load %arg2[%c16_9, %c1_10] : memref<32x2xf32, #tpu.memory_space<vmem>>, vector<16x1xf32>
    %c16_11 = arith.constant 16 : index
    %c0_12 = arith.constant 0 : index
    %7 = vector.load %arg3[%c16_11, %c0_12] : memref<32x1xf32, #tpu.memory_space<vmem>>, vector<16x1xf32>
    %c16_13 = arith.constant 16 : index
    %c0_14 = arith.constant 0 : index
    %8 = vector.load %arg4[%c16_13, %c0_14] : memref<32x1xf32, #tpu.memory_space<vmem>>, vector<16x1xf32>
    %c0_15 = arith.constant 0 : index
    %c0_16 = arith.constant 0 : index
    %9 = vector.load %arg1[%c0_15, %c0_16] : memref<2x8xf32, #tpu.memory_space<vmem>>, vector<1x8xf32>
    %c1_17 = arith.constant 1 : index
    %c0_18 = arith.constant 0 : index
    %10 = vector.load %arg1[%c1_17, %c0_18] : memref<2x8xf32, #tpu.memory_space<vmem>>, vector<1x8xf32>
    %11 = vector.broadcast %1 : vector<16x1xf32> to vector<16x8xf32>
    %12 = vector.broadcast %9 : vector<1x8xf32> to vector<16x8xf32>
    %13 = arith.mulf %11, %12 : vector<16x8xf32>
    %14 = vector.broadcast %2 : vector<16x1xf32> to vector<16x8xf32>
    %15 = vector.broadcast %10 : vector<1x8xf32> to vector<16x8xf32>
    %16 = arith.mulf %14, %15 : vector<16x8xf32>
    %17 = arith.addf %13, %16 : vector<16x8xf32>
    %18 = vector.broadcast %3 : vector<16x1xf32> to vector<16x8xf32>
    %19 = arith.addf %17, %18 : vector<16x8xf32>
    %cst = arith.constant 0.000000e+00 : f32
    %20 = vector.broadcast %cst : f32 to vector<16x8xf32>
    %21 = arith.maximumf %19, %20 : vector<16x8xf32>
    %22 = vector.broadcast %4 : vector<16x1xf32> to vector<16x8xf32>
    %23 = arith.mulf %22, %21 : vector<16x8xf32>
    %cst_19 = arith.constant dense<0.000000e+00> : vector<8xf32>
    %24 = vector.multi_reduction <add>, %23, %cst_19 [0] : vector<16x8xf32> to vector<8xf32>
    %25 = vector.shape_cast %24 : vector<8xf32> to vector<1x8xf32>
    %26 = vector.broadcast %5 : vector<16x1xf32> to vector<16x8xf32>
    %27 = vector.broadcast %9 : vector<1x8xf32> to vector<16x8xf32>
    %28 = arith.mulf %26, %27 : vector<16x8xf32>
    %29 = vector.broadcast %6 : vector<16x1xf32> to vector<16x8xf32>
    %30 = vector.broadcast %10 : vector<1x8xf32> to vector<16x8xf32>
    %31 = arith.mulf %29, %30 : vector<16x8xf32>
    %32 = arith.addf %28, %31 : vector<16x8xf32>
    %33 = vector.broadcast %7 : vector<16x1xf32> to vector<16x8xf32>
    %34 = arith.addf %32, %33 : vector<16x8xf32>
    %cst_20 = arith.constant 0.000000e+00 : f32
    %35 = vector.broadcast %cst_20 : f32 to vector<16x8xf32>
    %36 = arith.maximumf %34, %35 : vector<16x8xf32>
    %37 = vector.broadcast %8 : vector<16x1xf32> to vector<16x8xf32>
    %38 = arith.mulf %37, %36 : vector<16x8xf32>
    %cst_21 = arith.constant dense<0.000000e+00> : vector<8xf32>
    %39 = vector.multi_reduction <add>, %38, %cst_21 [0] : vector<16x8xf32> to vector<8xf32>
    %40 = vector.shape_cast %39 : vector<8xf32> to vector<1x8xf32>
    %41 = arith.addf %25, %40 : vector<1x8xf32>
    %42 = vector.broadcast %0 : f32 to vector<1x8xf32>
    %43 = arith.addf %41, %42 : vector<1x8xf32>
    %cst_22 = arith.constant 0.000000e+00 : f32
    %44 = vector.broadcast %cst_22 : f32 to vector<1x8xf32>
    %45 = arith.maximumf %43, %44 : vector<1x8xf32>
    %c0_23 = arith.constant 0 : index
    %c0_24 = arith.constant 0 : index
    %46 = vector.load %arg6[%c0_23, %c0_24] : memref<1x8xf32, #tpu.memory_space<vmem>>, vector<1x8xf32>
    tpu.vector_store %arg6[%c0_23, %c0_24], %45 {strides = array<i32>} : memref<1x8xf32, #tpu.memory_space<vmem>>, vector<1x8xf32>,
    return
  }
  func.func @transform_0(%arg0: i32) -> (i32, i32) {
    %c0_i32 = arith.constant 0 : i32
    %c0_i32_0 = arith.constant 0 : i32
    return %c0_i32, %arg0 : i32, i32
  }
  func.func @transform_1(%arg0: i32) -> (i32, i32) {
    %c0_i32 = arith.constant 0 : i32
    %c0_i32_0 = arith.constant 0 : i32
    %c0_i32_1 = arith.constant 0 : i32
    return %c0_i32, %c0_i32_0 : i32, i32
  }
  func.func @transform_2(%arg0: i32) -> (i32, i32) {
    %c0_i32 = arith.constant 0 : i32
    %c0_i32_0 = arith.constant 0 : i32
    %c0_i32_1 = arith.constant 0 : i32
    return %c0_i32, %c0_i32_0 : i32, i32
  }
  func.func @transform_3(%arg0: i32) -> (i32, i32) {
    %c0_i32 = arith.constant 0 : i32
    %c0_i32_0 = arith.constant 0 : i32
    %c0_i32_1 = arith.constant 0 : i32
    return %c0_i32, %c0_i32_0 : i32, i32
  }
  func.func @transform_4(%arg0: i32) -> (i32, i32) {
    %c0_i32 = arith.constant 0 : i32
    %c0_i32_0 = arith.constant 0 : i32
    %c0_i32_1 = arith.constant 0 : i32
    return %c0_i32, %c0_i32_0 : i32, i32
  }
  func.func @transform_5(%arg0: i32) -> (i32, i32) {
    %c0_i32 = arith.constant 0 : i32
    %c0_i32_0 = arith.constant 0 : i32
    return %c0_i32, %arg0 : i32, i32
  }
}

</mosaic_0001>

<llo_original>
// kernel: tpu_custom_call.1
$region0: #{tpu_custom_call.1}
  #allocation0 [shape = 'u32[]', space=smem, size = 0x4, offset = 0x4, fixed_abs, tag = 'smem constant byte address 0x4 - core index']
  #allocation1 [shape = 'u32[144,128]{1,0:T(1,128)}', space=vmem, size = 0x12000, scoped, tag = 'internal scratch']
  #allocation2 [shape = 'f32[1,1]{1,0:T(1,128)S(6)}', space=smem, size = 0x200, scoped, tag = 'scoped memory for tpu_custom_call.1']
  %s0 = inlined_call_operand.vmem [shape: f32[2,8], index: 0, kind: input, shape index: {}]
  %s1 = inlined_call_operand.vmem [shape: f32[32,2], index: 1, kind: input, shape index: {}]
  %s2 = inlined_call_operand.vmem [shape: f32[32,1], index: 2, kind: input, shape index: {}]
  %s3 = inlined_call_operand.vmem [shape: f32[32,1], index: 3, kind: input, shape index: {}]
  %s4 = inlined_call_operand.<no memory space> [shape: f32[1,1], index: 4, kind: input, shape index: {}]
  %s5 = inlined_call_operand.hbm [shape: f32[1,8], index: 5, kind: output, shape index: {}]
  %s6 = sld [smem:[#allocation0]]
  $region30: #{tpu_custom_call.1} parent=0
    _
  %s8 = ssub.s32 1, %s6
  %s9 = scalar_select 0, %s8, %s6
  %10 = sst [smem:[#allocation2]] %s4
  $region1: #{tpu_custom_call.1} parent=0
    #allocation3 [shape = 'u8[512]{0}', space=vmem, size = 0x400, scoped, tag = 'output window, operand 0, single buffered']
    #allocation4 [shape = 's32[1]{0}', space=sflag, size = 0x4, scoped, tag = 'scoped memory for tpu_custom_call.1']
    %11 = vsyncpa [#allocation4], 0
    // Predicated region
    $region2: #{tpu_custom_call.1} parent=1 // pred_check
      _
    $region3: #{tpu_custom_call.1} parent=1 // pred_check_branch
      %13 = sbr.rel (0) target = $region5
    $region4: #{tpu_custom_call.1} parent=1 // pred_region
      _
    $region5: #{tpu_custom_call.1} parent=1 // pred_fallthru
      _
    // Predicated region
    $region6: #{tpu_custom_call.1} parent=1 // pred_check
      _
    $region7: #{tpu_custom_call.1} parent=1 // pred_check_branch
      %15 = sbr.rel (0) target = $region9
    $region8: #{tpu_custom_call.1} parent=1 // pred_region
      _
    $region9: #{tpu_custom_call.1} parent=1 // pred_fallthru
      _
    // Predicated region
    $region10: #{tpu_custom_call.1} parent=1 // pred_check
      _
    $region11: #{tpu_custom_call.1} parent=1 // pred_check_branch
      %17 = sbr.rel (0) target = $region13
    $region12: #{tpu_custom_call.1} parent=1 // pred_region
      _
    $region13: #{tpu_custom_call.1} parent=1 // pred_fallthru
      _
    // Predicated region
    $region14: #{tpu_custom_call.1} parent=1 // pred_check
      _
    $region15: #{tpu_custom_call.1} parent=1 // pred_check_branch
      %19 = sbr.rel (0) target = $region17
    $region16: #{tpu_custom_call.1} parent=1 // pred_region
      _
    $region17: #{tpu_custom_call.1} parent=1 // pred_fallthru
      _
    // Predicated region
    $region18: #{tpu_custom_call.1} parent=1 // pred_check
      _
    $region19: #{tpu_custom_call.1} parent=1 // pred_check_branch
      %21 = sbr.rel (0) target = $region21
    $region20: #{tpu_custom_call.1} parent=1 // pred_region
      _
    $region21: #{tpu_custom_call.1} parent=1 // pred_fallthru
      _
    %s22 = sld [smem:[#allocation2]]
    %v23 = vld [vmem:[%s1] sm:$0xff]
    %v24 = vld [vmem:[%s1 + $0x8] sm:$0xff]
    %v25 = vld [vmem:[%s2] sm:$0xff]
    %v26 = vld [vmem:[%s2 + $0x8] sm:$0xff]
    %v27 = vld [vmem:[%s3] sm:$0xff]
    %v28 = vld [vmem:[%s3 + $0x8] sm:$0xff]
    %v29 = vld [vmem:[%s1 + $0x10] sm:$0xff]
    %v30 = vld [vmem:[%s1 + $0x18] sm:$0xff]
    %v31 = vld [vmem:[%s2 + $0x10] sm:$0xff]
    %v32 = vld [vmem:[%s2 + $0x18] sm:$0xff]
    %v33 = vld [vmem:[%s3 + $0x10] sm:$0xff]
    %v34 = vld [vmem:[%s3 + $0x18] sm:$0xff]
    %v35 = vld [vmem:[%s0] sm:$0x1]
    %v36 = vld [vmem:[%s0 + $0x1] sm:$0x1]
    %38 = vset.pattern.permute.xlu0 0
    %39 = vperm.xlu0 %38, %v23
    %v40 = vpop.permute.xlu0 %39
    %43 = vset.pattern.permute.xlu0 0
    %44 = vperm.xlu0 %43, %v24
    %v45 = vpop.permute.xlu0 %44
    %v47 = vlaneseq
    %v48 = vshrl.u32 %v47, 7
    %v49 = vsub.s32 0, %v48
    %v50 = vrot.slane %v35, %v49
    %v51 = vmul.f32 %v40, %v50
    %v52 = vmul.f32 %v45, %v50
    %53 = vset.pattern.permute.xlu0 1
    %54 = vperm.xlu0 %53, %v23
    %v55 = vpop.permute.xlu0 %54
    %57 = vset.pattern.permute.xlu0 1
    %58 = vperm.xlu0 %57, %v24
    %v59 = vpop.permute.xlu0 %58
    %v61 = vlaneseq
    %v62 = vshrl.u32 %v61, 7
    %v63 = vsub.s32 0, %v62
    %v64 = vrot.slane %v36, %v63
    %v65 = vmul.f32 %v55, %v64
    %v66 = vmul.f32 %v59, %v64
    %v67 = vadd.f32 %v51, %v65
    %v68 = vadd.f32 %v52, %v66
    %70 = vset.pattern.permute.xlu0 0
    %71 = vperm.xlu0 %70, %v25
    %v72 = vpop.permute.xlu0 %71
    %75 = vset.pattern.permute.xlu0 0
    %76 = vperm.xlu0 %75, %v26
    %v77 = vpop.permute.xlu0 %76
    %v79 = vadd.f32 %v67, %v72
    %v80 = vadd.f32 %v68, %v77
    %v81 = vmax.f32 %v79, 0.0
    %v82 = vmax.f32 %v80, 0.0
    %84 = vset.pattern.permute.xlu0 0
    %85 = vperm.xlu0 %84, %v27
    %v86 = vpop.permute.xlu0 %85
    %89 = vset.pattern.permute.xlu0 0
    %90 = vperm.xlu0 %89, %v28
    %v91 = vpop.permute.xlu0 %90
    %v93 = vmul.f32 %v86, %v81
    %v94 = vmul.f32 %v91, %v82
    %vm95 = vcmask 64512
    %v96 = vsel %vm95, %v93, 0.0
    %v97 = vsel %vm95, %v94, 0.0
    %v98 = vadd.f32 %v96, %v97
    %v99 = vrot.slane %v98, 4
    %v100 = vadd.f32 %v98, %v99
    %v101 = vrot.slane %v100, 2
    %v102 = vadd.f32 %v100, %v101
    %v103 = vrot.slane %v102, 1
    %v104 = vadd.f32 %v102, %v103
    %106 = vset.pattern.permute.xlu0 0
    %107 = vperm.xlu0 %106, %v29
    %v108 = vpop.permute.xlu0 %107
    %111 = vset.pattern.permute.xlu0 0
    %112 = vperm.xlu0 %111, %v30
    %v113 = vpop.permute.xlu0 %112
    %v115 = vmul.f32 %v108, %v50
    %v116 = vmul.f32 %v113, %v50
    %117 = vset.pattern.permute.xlu0 1
    %118 = vperm.xlu0 %117, %v29
    %v119 = vpop.permute.xlu0 %118
    %121 = vset.pattern.permute.xlu0 1
    %122 = vperm.xlu0 %121, %v30
    %v123 = vpop.permute.xlu0 %122
    %v125 = vmul.f32 %v119, %v64
    %v126 = vmul.f32 %v123, %v64
    %v127 = vadd.f32 %v115, %v125
    %v128 = vadd.f32 %v116, %v126
    %130 = vset.pattern.permute.xlu0 0
    %131 = vperm.xlu0 %130, %v31
    %v132 = vpop.permute.xlu0 %131
    %135 = vset.pattern.permute.xlu0 0
    %136 = vperm.xlu0 %135, %v32
    %v137 = vpop.permute.xlu0 %136
    %v139 = vadd.f32 %v127, %v132
    %v140 = vadd.f32 %v128, %v137
    %v141 = vmax.f32 %v139, 0.0
    %v142 = vmax.f32 %v140, 0.0
    %144 = vset.pattern.permute.xlu0 0
    %145 = vperm.xlu0 %144, %v33
    %v146 = vpop.permute.xlu0 %145
    %149 = vset.pattern.permute.xlu0 0
    %150 = vperm.xlu0 %149, %v34
    %v151 = vpop.permute.xlu0 %150
    %v153 = vmul.f32 %v146, %v141
    %v154 = vmul.f32 %v151, %v142
    %v155 = vsel %vm95, %v153, 0.0
    %v156 = vsel %vm95, %v154, 0.0
    %v157 = vadd.f32 %v155, %v156
    %v158 = vrot.slane %v157, 4
    %v159 = vadd.f32 %v157, %v158
    %v160 = vrot.slane %v159, 2
    %v161 = vadd.f32 %v159, %v160
    %v162 = vrot.slane %v161, 1
    %v163 = vadd.f32 %v161, %v162
    %v164 = vadd.f32 %v104, %v163
    %v165 = vstv %s22
    %v166 = vadd.f32 %v164, %v165
    %v167 = vmax.f32 %v166, 0.0
    %vm168 = vcmask 57344
    %169 = vst.msk [vmem:[#allocation3] sm:$0x1] %vm168, %v167
    // Predicated region
    $region22: #{tpu_custom_call.1} parent=1 // pred_check
      _
    $region23: #{tpu_custom_call.1} parent=1 // pred_check_branch
      %171 = sbr.rel (0) target = $region25
    $region24: #{tpu_custom_call.1} parent=1 // pred_region
      %s173 = ssub.s32 16, 16
      %174 = vsyncadd [#allocation4], %s173
      %s176 = sshll.u32 [#allocation3], 4
      %s177 = int_to_ptr.vmem [resolvable:$true] %s176
      %179 = dma.vmem_to_hbm [thread:$0]  %s177, 16, %s5, [#allocation4]
    $region25: #{tpu_custom_call.1} parent=1 // pred_fallthru
      _
    // Predicated region
    $region26: #{tpu_custom_call.1} parent=1 // pred_check
      _
    $region27: #{tpu_custom_call.1} parent=1 // pred_check_branch
      %181 = sbr.rel (0) target = $region29
    $region28: #{tpu_custom_call.1} parent=1 // pred_region
      %182 = dma.done [#allocation4], 16
    $region29: #{tpu_custom_call.1} parent=1 // pred_fallthru
      _
    %183 = vsyncpa [#allocation4], 1

</llo_original>
